<compile_context>
chip_gen: v6e
topology: v6e:2x2x1
jax: 0.10.0
libtpu: 0.0.40
codegen_flags: <defaults>
</compile_context>

<pallas_src>
import functools

import jax
import jax.numpy as jnp
from jax.experimental import pallas as pl
from jax.experimental.pallas import tpu as pltpu

EPS = 1e-5


def _fused_norm(x, g, b, *, unbiased=False, eps=EPS):
    """g*(x-mean)*rsqrt(var+eps)+b with per-row stats over the lane axis.

    Two-pass (centered) variance for numerical robustness; applied as one
    subtract + FMA on the activations.
    """
    n = x.shape[-1]
    m = jnp.mean(x, axis=-1, keepdims=True)
    d = x - m
    v = jnp.mean(d * d, axis=-1, keepdims=True)
    if unbiased:
        v = v * (n / (n - 1))
    return d * (g * jax.lax.rsqrt(v + eps)) + b


def bcresblock_kernel(x_ref, p_ref, c_ref, o_ref, *, B, Cin, Cout, F, T):
    S = F * T
    N = B * S                 # columns on the 128-lane minor axis
    BT = B * T

    # ---- constant slab (host-precomputed, 1 DMA): selection matrix + masks ----
    consts = c_ref[...]
    bcast = consts[0:BT, :]                 # (BT, N) 0/1: column n <-> row b*T + t
    mask_lo = consts[BT:BT + 1, :]          # (1, N)  1.0 where f > 0
    mask_hi = consts[BT + 1:BT + 2, :]      # (1, N)  1.0 where f < F-1

    # ---- packed parameter slab (1 DMA) ----
    P = p_ref[...]                          # (8, 128)
    W2 = P[0:Cout, 0:3 * Cin]               # f2 weights (Cout, 3*Cin), col = k*Cin + ci
    W1 = P[0:Cin, 16:16 + Cin]              # init_conv weights (out, in)
    b1 = P[0:Cin, 32:33]
    g1 = P[0:Cin, 33:34]
    be1 = P[0:Cin, 34:35]
    b2 = P[0:Cout, 35:36]
    gs = P[0:Cout, 36:37]
    bs = P[0:Cout, 37:38]
    g2 = P[0:Cout, 38:39]
    be2 = P[0:Cout, 39:40]

    # ---- lane-dense transposed activations: (Cin, N), columns ordered (b, f, t) ----
    xt = jnp.concatenate([x_ref[b] for b in range(B)], axis=-1)

    # ---- init_conv (1x1): Cin broadcast-FMAs on the VPU (M<=8 -> skip the MXU) ----
    y = b1 + W1[:, 0:1] * xt[0:1, :]
    for i in range(1, Cin):
        y = y + W1[:, i:i + 1] * xt[i:i + 1, :]
    # fused bn1 (batch stats, biased var) + ReLU
    y = jnp.maximum(_fused_norm(y, g1, be1), 0.0)                     # (Cin, N)

    # ---- f2: (3,1) conv over frequency.  Taps via static lane rolls + boundary
    #      masks, accumulated with 3*Cin broadcast-FMAs (no im2col, no MXU). ----
    y_m1 = jnp.roll(y, T, axis=1) * mask_lo      # value at f-1 (zero at f=0)
    y_p1 = jnp.roll(y, -T, axis=1) * mask_hi     # value at f+1 (zero at f=F-1)
    taps = (y_m1, y, y_p1)
    acc = b2 + W2[:, 0:1] * taps[0][0:1, :]
    for k in range(3):
        for ci in range(Cin):
            if k == 0 and ci == 0:
                continue
            j = k * Cin + ci
            acc = acc + W2[:, j:j + 1] * taps[k][ci:ci + 1, :]

    # ---- SubSpectralNorm (S=1): per-channel, UNBIASED variance over B*F*T ----
    x1 = _fused_norm(acc, gs, bs, unbiased=True)                      # (Cout, N)

    # ---- AdaptiveAvgPool2d((1, None)): sum over F as one lane-dense matmul,
    #      contracting the N axes of x1 and the selection matrix ----
    pooled_f = jax.lax.dot_general(x1, bcast, (((1,), (1,)), ((), ())),
                                   preferred_element_type=jnp.float32)  # (Cout, BT) = F*mean

    # ---- fused bn2 + Swish; 1/F folded exactly: bn2(p/F) == (p-mean)*g*rsqrt(var+eps*F^2)+b ----
    p = _fused_norm(pooled_f, g2, be2, eps=EPS * float(F * F))
    s = p * jax.nn.sigmoid(p)                                         # (Cout, BT)

    # ---- broadcast back over F with the SAME selection matrix + residual add ----
    out_t = x1 + jnp.dot(s, bcast, preferred_element_type=jnp.float32)  # (Cout, N)

    # ---- back to (B, Cout, F*T): lane-dense (S-wide) stores, one per batch ----
    for b in range(B):
        o_ref[b] = out_t[:, b * S:(b + 1) * S]


def _pack_params(params, Cin, Cout):
    """All weights + per-channel vectors packed into one (8,128) f32 tile (1 DMA)."""
    P = jnp.zeros((8, 128), jnp.float32)
    w2_t = jnp.transpose(params["w2"].reshape(3 * Cin, Cout)).astype(jnp.float32)  # (Cout, 3*Cin)
    w1_t = jnp.transpose(params["w1"]).astype(jnp.float32)                          # (out, in)
    P = P.at[0:Cout, 0:3 * Cin].set(w2_t)
    P = P.at[0:Cin, 16:16 + Cin].set(w1_t)
    for name, c, col in (("b1", Cin, 32), ("bn1_g", Cin, 33), ("bn1_b", Cin, 34),
                         ("b2", Cout, 35), ("ssn_g", Cout, 36), ("ssn_b", Cout, 37),
                         ("bn2_g", Cout, 38), ("bn2_b", Cout, 39)):
        P = P.at[0:c, col].set(params[name].reshape(-1).astype(jnp.float32))
    return P


def _const_slab(B, F, T):
    """Index-derived constants, built on the host (constant-folded under jit):
       rows 0:BT  -> 0/1 selection matrix (freq pool + broadcast-back)
       row  BT    -> mask for the f-1 conv tap (f > 0)
       row  BT+1  -> mask for the f+1 conv tap (f < F-1)
    """
    S, N, BT = F * T, B * F * T, B * T
    n = jnp.arange(N)
    m_of_n = (n // S) * T + (n % T)                       # column n -> b*T + t
    bcast = (jnp.arange(BT)[:, None] == m_of_n[None, :]).astype(jnp.float32)
    f_of_n = (n // T) % F
    mask_lo = (f_of_n > 0).astype(jnp.float32)[None, :]
    mask_hi = (f_of_n < F - 1).astype(jnp.float32)[None, :]
    pad = (-(BT + 2)) % 8
    return jnp.concatenate([bcast, mask_lo, mask_hi,
                            jnp.zeros((pad, N), jnp.float32)], axis=0)


def bcresblock_forward(x_nchw, params):
    """x_nchw: (B, C_in, F, T) float32 -> (B, C_out, F, T) float32."""
    B, Cin, F, T = x_nchw.shape
    Cout = params["w2"].shape[-1]
    S = F * T
    x3 = x_nchw.reshape(B, Cin, S).astype(jnp.float32)    # free reshape, no transpose

    vmem = pl.BlockSpec(memory_space=pltpu.MemorySpace.VMEM)
    out = pl.pallas_call(
        functools.partial(bcresblock_kernel, B=B, Cin=Cin, Cout=Cout, F=F, T=T),
        out_shape=jax.ShapeDtypeStruct((B, Cout, S), jnp.float32),
        in_specs=[vmem, vmem, vmem],
        out_specs=vmem,
    )(x3, _pack_params(params, Cin, Cout), _const_slab(B, F, T))
    # TODO(synk): at production BCResNet sizes, add a (batch, T-tile) grid with
    # accumulated batch statistics + a streaming F-pool instead of this
    # whole-array-in-VMEM single-program design (v7x VMEM / 2nd-TC concerns).
    return out.reshape(B, Cout, F, T)                      # free reshape


def bcresblock_reference(x, params):
    """Pure-JAX NCHW reference mirroring the PyTorch forward (training mode)."""
    hi = jax.lax.Precision.HIGHEST
    r = lambda a: a.reshape(1, -1, 1, 1)
    y = jnp.einsum("ncft,co->noft", x, params["w1"], precision=hi) + r(params["b1"])
    m = y.mean(axis=(0, 2, 3), keepdims=True)
    v = ((y - m) ** 2).mean(axis=(0, 2, 3), keepdims=True)
    y = r(params["bn1_g"]) * (y - m) * jax.lax.rsqrt(v + EPS) + r(params["bn1_b"])
    y = jnp.maximum(y, 0.0)
    F = x.shape[2]
    yp = jnp.pad(y, ((0, 0), (0, 0), (1, 1), (0, 0)))
    x1 = sum(jnp.einsum("ncft,co->noft", yp[:, :, k:k + F, :], params["w2"][k],
                        precision=hi) for k in range(3)) + r(params["b2"])
    n = x1.shape[0] * x1.shape[2] * x1.shape[3]
    m = x1.mean(axis=(0, 2, 3), keepdims=True)
    v = ((x1 - m) ** 2).sum(axis=(0, 2, 3), keepdims=True) / (n - 1)
    x1 = r(params["ssn_g"]) * (x1 - m) * jax.lax.rsqrt(v + EPS) + r(params["ssn_b"])
    p = x1.mean(axis=2, keepdims=True)
    m = p.mean(axis=(0, 2, 3), keepdims=True)
    v = ((p - m) ** 2).mean(axis=(0, 2, 3), keepdims=True)
    p = r(params["bn2_g"]) * (p - m) * jax.lax.rsqrt(v + EPS) + r(params["bn2_b"])
    p = p * jax.nn.sigmoid(p)
    return x1 + p


if __name__ == "__main__":
    B, Cin, Cout, F, T = 2, 4, 8, 16, 16       # stride=1, dilation=1, S=1
    key = jax.random.PRNGKey(0)
    ks = jax.random.split(key, 12)

    params = {
        "w1":    jax.random.normal(ks[0], (Cin, Cin), jnp.float32) * 0.5,   # init_conv weight (in,out)
        "b1":    jax.random.normal(ks[1], (1, Cin), jnp.float32) * 0.1,     # init_conv bias
        "bn1_g": jax.random.uniform(ks[2], (1, Cin), jnp.float32, 0.5, 1.5),
        "bn1_b": jax.random.normal(ks[3], (1, Cin), jnp.float32) * 0.1,
        "w2":    jax.random.normal(ks[4], (3, Cin, Cout), jnp.float32) * 0.3,  # f2 weight: (kF, in, out)
        "b2":    jax.random.normal(ks[5], (1, Cout), jnp.float32) * 0.1,
        "ssn_g": jax.random.uniform(ks[6], (1, Cout), jnp.float32),          # ~ torch.rand
        "ssn_b": jax.random.uniform(ks[7], (1, Cout), jnp.float32),
        "bn2_g": jax.random.uniform(ks[8], (1, Cout), jnp.float32, 0.5, 1.5),
        "bn2_b": jax.random.normal(ks[9], (1, Cout), jnp.float32) * 0.1,
    }
    x = jax.random.normal(ks[10], (B, Cin, F, T), jnp.float32)

    fwd = jax.jit(bcresblock_forward)
    out = jax.block_until_ready(fwd(x, params))
    ref = jax.block_until_ready(bcresblock_reference(x, params))

    assert out.shape == (B, Cout, F, T), out.shape
    assert jnp.allclose(out, ref, atol=3e-2, rtol=3e-2), float(jnp.max(jnp.abs(out - ref)))
    print("KERNEL_OK")
</pallas_src>

<mosaic_0001>
module attributes {stable_mosaic.version = 11 : i64} {
  func.func @bcresblock_kernel(%arg0: memref<2x4x256xf32, #tpu.memory_space<vmem>>, %arg1: memref<8x128xf32, #tpu.memory_space<vmem>>, %arg2: memref<40x512xf32, #tpu.memory_space<vmem>>, %arg3: memref<2x8x256xf32, #tpu.memory_space<vmem>>) attributes {dimension_semantics = [], scalar_prefetch = 0 : i64, scratch_operands = 0 : i64, tpu.core_type = #tpu.core_type<tc>} {
    %c0 = arith.constant 0 : index
    %c0_0 = arith.constant 0 : index
    %0 = vector.load %arg2[%c0, %c0_0] : memref<40x512xf32, #tpu.memory_space<vmem>>, vector<40x512xf32>
    %1 = vector.extract_strided_slice %0 {offsets = [0, 0], sizes = [32, 512], strides = [1, 1]} : vector<40x512xf32> to vector<32x512xf32>
    %2 = vector.extract_strided_slice %0 {offsets = [32, 0], sizes = [1, 512], strides = [1, 1]} : vector<40x512xf32> to vector<1x512xf32>
    %3 = vector.extract_strided_slice %0 {offsets = [33, 0], sizes = [1, 512], strides = [1, 1]} : vector<40x512xf32> to vector<1x512xf32>
    %c0_1 = arith.constant 0 : index
    %c0_2 = arith.constant 0 : index
    %4 = vector.load %arg1[%c0_1, %c0_2] : memref<8x128xf32, #tpu.memory_space<vmem>>, vector<8x128xf32>
    %5 = vector.extract_strided_slice %4 {offsets = [0, 0], sizes = [8, 12], strides = [1, 1]} : vector<8x128xf32> to vector<8x12xf32>
    %6 = vector.extract_strided_slice %4 {offsets = [0, 16], sizes = [4, 4], strides = [1, 1]} : vector<8x128xf32> to vector<4x4xf32>
    %7 = vector.extract_strided_slice %4 {offsets = [0, 32], sizes = [4, 1], strides = [1, 1]} : vector<8x128xf32> to vector<4x1xf32>
    %8 = vector.extract_strided_slice %4 {offsets = [0, 33], sizes = [4, 1], strides = [1, 1]} : vector<8x128xf32> to vector<4x1xf32>
    %9 = vector.extract_strided_slice %4 {offsets = [0, 34], sizes = [4, 1], strides = [1, 1]} : vector<8x128xf32> to vector<4x1xf32>
    %10 = vector.extract_strided_slice %4 {offsets = [0, 35], sizes = [8, 1], strides = [1, 1]} : vector<8x128xf32> to vector<8x1xf32>
    %11 = vector.extract_strided_slice %4 {offsets = [0, 36], sizes = [8, 1], strides = [1, 1]} : vector<8x128xf32> to vector<8x1xf32>
    %12 = vector.extract_strided_slice %4 {offsets = [0, 37], sizes = [8, 1], strides = [1, 1]} : vector<8x128xf32> to vector<8x1xf32>
    %13 = vector.extract_strided_slice %4 {offsets = [0, 38], sizes = [8, 1], strides = [1, 1]} : vector<8x128xf32> to vector<8x1xf32>
    %14 = vector.extract_strided_slice %4 {offsets = [0, 39], sizes = [8, 1], strides = [1, 1]} : vector<8x128xf32> to vector<8x1xf32>
    %c0_3 = arith.constant 0 : index
    %c0_4 = arith.constant 0 : index
    %c0_5 = arith.constant 0 : index
    %15 = vector.load %arg0[%c0_3, %c0_4, %c0_5] : memref<2x4x256xf32, #tpu.memory_space<vmem>>, vector<1x4x256xf32>
    %16 = vector.shape_cast %15 : vector<1x4x256xf32> to vector<4x256xf32>
    %c1 = arith.constant 1 : index
    %c0_6 = arith.constant 0 : index
    %c0_7 = arith.constant 0 : index
    %17 = vector.load %arg0[%c1, %c0_6, %c0_7] : memref<2x4x256xf32, #tpu.memory_space<vmem>>, vector<1x4x256xf32>
    %18 = vector.shape_cast %17 : vector<1x4x256xf32> to vector<4x256xf32>
    %19 = tpu.concatenate %16, %18 in 1 : vector<4x256xf32>, vector<4x256xf32> -> vector<4x512xf32>
    %20 = vector.extract_strided_slice %6 {offsets = [0, 0], sizes = [4, 1], strides = [1, 1]} : vector<4x4xf32> to vector<4x1xf32>
    %21 = vector.extract_strided_slice %19 {offsets = [0, 0], sizes = [1, 512], strides = [1, 1]} : vector<4x512xf32> to vector<1x512xf32>
    %22 = vector.broadcast %20 : vector<4x1xf32> to vector<4x512xf32>
    %23 = vector.broadcast %21 : vector<1x512xf32> to vector<4x512xf32>
    %24 = arith.mulf %22, %23 : vector<4x512xf32>
    %25 = vector.broadcast %7 : vector<4x1xf32> to vector<4x512xf32>
    %26 = arith.addf %25, %24 : vector<4x512xf32>
    %27 = vector.extract_strided_slice %6 {offsets = [0, 1], sizes = [4, 1], strides = [1, 1]} : vector<4x4xf32> to vector<4x1xf32>
    %28 = vector.extract_strided_slice %19 {offsets = [1, 0], sizes = [1, 512], strides = [1, 1]} : vector<4x512xf32> to vector<1x512xf32>
    %29 = vector.broadcast %27 : vector<4x1xf32> to vector<4x512xf32>
    %30 = vector.broadcast %28 : vector<1x512xf32> to vector<4x512xf32>
    %31 = arith.mulf %29, %30 : vector<4x512xf32>
    %32 = arith.addf %26, %31 : vector<4x512xf32>
    %33 = vector.extract_strided_slice %6 {offsets = [0, 2], sizes = [4, 1], strides = [1, 1]} : vector<4x4xf32> to vector<4x1xf32>
    %34 = vector.extract_strided_slice %19 {offsets = [2, 0], sizes = [1, 512], strides = [1, 1]} : vector<4x512xf32> to vector<1x512xf32>
    %35 = vector.broadcast %33 : vector<4x1xf32> to vector<4x512xf32>
    %36 = vector.broadcast %34 : vector<1x512xf32> to vector<4x512xf32>
    %37 = arith.mulf %35, %36 : vector<4x512xf32>
    %38 = arith.addf %32, %37 : vector<4x512xf32>
    %39 = vector.extract_strided_slice %6 {offsets = [0, 3], sizes = [4, 1], strides = [1, 1]} : vector<4x4xf32> to vector<4x1xf32>
    %40 = vector.extract_strided_slice %19 {offsets = [3, 0], sizes = [1, 512], strides = [1, 1]} : vector<4x512xf32> to vector<1x512xf32>
    %41 = vector.broadcast %39 : vector<4x1xf32> to vector<4x512xf32>
    %42 = vector.broadcast %40 : vector<1x512xf32> to vector<4x512xf32>
    %43 = arith.mulf %41, %42 : vector<4x512xf32>
    %44 = arith.addf %38, %43 : vector<4x512xf32>
    %cst = arith.constant dense<0.000000e+00> : vector<4xf32>
    %45 = vector.multi_reduction <add>, %44, %cst [1] : vector<4x512xf32> to vector<4xf32>
    %46 = vector.shape_cast %45 : vector<4xf32> to vector<4x1xf32>
    %cst_8 = arith.constant 5.120000e+02 : f32
    %47 = vector.broadcast %cst_8 : f32 to vector<4x1xf32>
    %48 = arith.divf %46, %47 : vector<4x1xf32>
    %49 = vector.broadcast %48 : vector<4x1xf32> to vector<4x512xf32>
    %50 = arith.subf %44, %49 : vector<4x512xf32>
    %51 = arith.mulf %50, %50 : vector<4x512xf32>
    %cst_9 = arith.constant dense<0.000000e+00> : vector<4xf32>
    %52 = vector.multi_reduction <add>, %51, %cst_9 [1] : vector<4x512xf32> to vector<4xf32>
    %53 = vector.shape_cast %52 : vector<4xf32> to vector<4x1xf32>
    %cst_10 = arith.constant 5.120000e+02 : f32
    %54 = vector.broadcast %cst_10 : f32 to vector<4x1xf32>
    %55 = arith.divf %53, %54 : vector<4x1xf32>
    %cst_11 = arith.constant 9.99999974E-6 : f32
    %56 = vector.broadcast %cst_11 : f32 to vector<4x1xf32>
    %57 = arith.addf %55, %56 : vector<4x1xf32>
    %58 = math.rsqrt %57 : vector<4x1xf32>
    %59 = arith.mulf %8, %58 : vector<4x1xf32>
    %60 = vector.broadcast %59 : vector<4x1xf32> to vector<4x512xf32>
    %61 = arith.mulf %50, %60 : vector<4x512xf32>
    %62 = vector.broadcast %9 : vector<4x1xf32> to vector<4x512xf32>
    %63 = arith.addf %61, %62 : vector<4x512xf32>
    %cst_12 = arith.constant 0.000000e+00 : f32
    %64 = vector.broadcast %cst_12 : f32 to vector<4x512xf32>
    %65 = arith.maximumf %63, %64 : vector<4x512xf32>
    %66 = vector.extract_strided_slice %65 {offsets = [0, 496], sizes = [4, 16], strides = [1, 1]} : vector<4x512xf32> to vector<4x16xf32>
    %67 = vector.extract_strided_slice %65 {offsets = [0, 0], sizes = [4, 496], strides = [1, 1]} : vector<4x512xf32> to vector<4x496xf32>
    %68 = tpu.concatenate %66, %67 in 1 : vector<4x16xf32>, vector<4x496xf32> -> vector<4x512xf32>
    %69 = vector.broadcast %2 : vector<1x512xf32> to vector<4x512xf32>
    %70 = arith.mulf %68, %69 : vector<4x512xf32>
    %71 = vector.extract_strided_slice %65 {offsets = [0, 16], sizes = [4, 496], strides = [1, 1]} : vector<4x512xf32> to vector<4x496xf32>
    %72 = vector.extract_strided_slice %65 {offsets = [0, 0], sizes = [4, 16], strides = [1, 1]} : vector<4x512xf32> to vector<4x16xf32>
    %73 = tpu.concatenate %71, %72 in 1 : vector<4x496xf32>, vector<4x16xf32> -> vector<4x512xf32>
    %74 = vector.broadcast %3 : vector<1x512xf32> to vector<4x512xf32>
    %75 = arith.mulf %73, %74 : vector<4x512xf32>
    %76 = vector.extract_strided_slice %5 {offsets = [0, 0], sizes = [8, 1], strides = [1, 1]} : vector<8x12xf32> to vector<8x1xf32>
    %77 = vector.extract_strided_slice %70 {offsets = [0, 0], sizes = [1, 512], strides = [1, 1]} : vector<4x512xf32> to vector<1x512xf32>
    %78 = vector.broadcast %76 : vector<8x1xf32> to vector<8x512xf32>
    %79 = vector.broadcast %77 : vector<1x512xf32> to vector<8x512xf32>
    %80 = arith.mulf %78, %79 : vector<8x512xf32>
    %81 = vector.broadcast %10 : vector<8x1xf32> to vector<8x512xf32>
    %82 = arith.addf %81, %80 : vector<8x512xf32>
    %83 = vector.extract_strided_slice %5 {offsets = [0, 1], sizes = [8, 1], strides = [1, 1]} : vector<8x12xf32> to vector<8x1xf32>
    %84 = vector.extract_strided_slice %70 {offsets = [1, 0], sizes = [1, 512], strides = [1, 1]} : vector<4x512xf32> to vector<1x512xf32>
    %85 = vector.broadcast %83 : vector<8x1xf32> to vector<8x512xf32>
    %86 = vector.broadcast %84 : vector<1x512xf32> to vector<8x512xf32>
    %87 = arith.mulf %85, %86 : vector<8x512xf32>
    %88 = arith.addf %82, %87 : vector<8x512xf32>
    %89 = vector.extract_strided_slice %5 {offsets = [0, 2], sizes = [8, 1], strides = [1, 1]} : vector<8x12xf32> to vector<8x1xf32>
    %90 = vector.extract_strided_slice %70 {offsets = [2, 0], sizes = [1, 512], strides = [1, 1]} : vector<4x512xf32> to vector<1x512xf32>
    %91 = vector.broadcast %89 : vector<8x1xf32> to vector<8x512xf32>
    %92 = vector.broadcast %90 : vector<1x512xf32> to vector<8x512xf32>
    %93 = arith.mulf %91, %92 : vector<8x512xf32>
    %94 = arith.addf %88, %93 : vector<8x512xf32>
    %95 = vector.extract_strided_slice %5 {offsets = [0, 3], sizes = [8, 1], strides = [1, 1]} : vector<8x12xf32> to vector<8x1xf32>
    %96 = vector.extract_strided_slice %70 {offsets = [3, 0], sizes = [1, 512], strides = [1, 1]} : vector<4x512xf32> to vector<1x512xf32>
    %97 = vector.broadcast %95 : vector<8x1xf32> to vector<8x512xf32>
    %98 = vector.broadcast %96 : vector<1x512xf32> to vector<8x512xf32>
    %99 = arith.mulf %97, %98 : vector<8x512xf32>
    %100 = arith.addf %94, %99 : vector<8x512xf32>
    %101 = vector.extract_strided_slice %5 {offsets = [0, 4], sizes = [8, 1], strides = [1, 1]} : vector<8x12xf32> to vector<8x1xf32>
    %102 = vector.extract_strided_slice %65 {offsets = [0, 0], sizes = [1, 512], strides = [1, 1]} : vector<4x512xf32> to vector<1x512xf32>
    %103 = vector.broadcast %101 : vector<8x1xf32> to vector<8x512xf32>
    %104 = vector.broadcast %102 : vector<1x512xf32> to vector<8x512xf32>
    %105 = arith.mulf %103, %104 : vector<8x512xf32>
    %106 = arith.addf %100, %105 : vector<8x512xf32>
    %107 = vector.extract_strided_slice %5 {offsets = [0, 5], sizes = [8, 1], strides = [1, 1]} : vector<8x12xf32> to vector<8x1xf32>
    %108 = vector.extract_strided_slice %65 {offsets = [1, 0], sizes = [1, 512], strides = [1, 1]} : vector<4x512xf32> to vector<1x512xf32>
    %109 = vector.broadcast %107 : vector<8x1xf32> to vector<8x512xf32>
    %110 = vector.broadcast %108 : vector<1x512xf32> to vector<8x512xf32>
    %111 = arith.mulf %109, %110 : vector<8x512xf32>
    %112 = arith.addf %106, %111 : vector<8x512xf32>
    %113 = vector.extract_strided_slice %5 {offsets = [0, 6], sizes = [8, 1], strides = [1, 1]} : vector<8x12xf32> to vector<8x1xf32>
    %114 = vector.extract_strided_slice %65 {offsets = [2, 0], sizes = [1, 512], strides = [1, 1]} : vector<4x512xf32> to vector<1x512xf32>
    %115 = vector.broadcast %113 : vector<8x1xf32> to vector<8x512xf32>
    %116 = vector.broadcast %114 : vector<1x512xf32> to vector<8x512xf32>
    %117 = arith.mulf %115, %116 : vector<8x512xf32>
    %118 = arith.addf %112, %117 : vector<8x512xf32>
    %119 = vector.extract_strided_slice %5 {offsets = [0, 7], sizes = [8, 1], strides = [1, 1]} : vector<8x12xf32> to vector<8x1xf32>
    %120 = vector.extract_strided_slice %65 {offsets = [3, 0], sizes = [1, 512], strides = [1, 1]} : vector<4x512xf32> to vector<1x512xf32>
    %121 = vector.broadcast %119 : vector<8x1xf32> to vector<8x512xf32>
    %122 = vector.broadcast %120 : vector<1x512xf32> to vector<8x512xf32>
    %123 = arith.mulf %121, %122 : vector<8x512xf32>
    %124 = arith.addf %118, %123 : vector<8x512xf32>
    %125 = vector.extract_strided_slice %5 {offsets = [0, 8], sizes = [8, 1], strides = [1, 1]} : vector<8x12xf32> to vector<8x1xf32>
    %126 = vector.extract_strided_slice %75 {offsets = [0, 0], sizes = [1, 512], strides = [1, 1]} : vector<4x512xf32> to vector<1x512xf32>
    %127 = vector.broadcast %125 : vector<8x1xf32> to vector<8x512xf32>
    %128 = vector.broadcast %126 : vector<1x512xf32> to vector<8x512xf32>
    %129 = arith.mulf %127, %128 : vector<8x512xf32>
    %130 = arith.addf %124, %129 : vector<8x512xf32>
    %131 = vector.extract_strided_slice %5 {offsets = [0, 9], sizes = [8, 1], strides = [1, 1]} : vector<8x12xf32> to vector<8x1xf32>
    %132 = vector.extract_strided_slice %75 {offsets = [1, 0], sizes = [1, 512], strides = [1, 1]} : vector<4x512xf32> to vector<1x512xf32>
    %133 = vector.broadcast %131 : vector<8x1xf32> to vector<8x512xf32>
    %134 = vector.broadcast %132 : vector<1x512xf32> to vector<8x512xf32>
    %135 = arith.mulf %133, %134 : vector<8x512xf32>
    %136 = arith.addf %130, %135 : vector<8x512xf32>
    %137 = vector.extract_strided_slice %5 {offsets = [0, 10], sizes = [8, 1], strides = [1, 1]} : vector<8x12xf32> to vector<8x1xf32>
    %138 = vector.extract_strided_slice %75 {offsets = [2, 0], sizes = [1, 512], strides = [1, 1]} : vector<4x512xf32> to vector<1x512xf32>
    %139 = vector.broadcast %137 : vector<8x1xf32> to vector<8x512xf32>
    %140 = vector.broadcast %138 : vector<1x512xf32> to vector<8x512xf32>
    %141 = arith.mulf %139, %140 : vector<8x512xf32>
    %142 = arith.addf %136, %141 : vector<8x512xf32>
    %143 = vector.extract_strided_slice %5 {offsets = [0, 11], sizes = [8, 1], strides = [1, 1]} : vector<8x12xf32> to vector<8x1xf32>
    %144 = vector.extract_strided_slice %75 {offsets = [3, 0], sizes = [1, 512], strides = [1, 1]} : vector<4x512xf32> to vector<1x512xf32>
    %145 = vector.broadcast %143 : vector<8x1xf32> to vector<8x512xf32>
    %146 = vector.broadcast %144 : vector<1x512xf32> to vector<8x512xf32>
    %147 = arith.mulf %145, %146 : vector<8x512xf32>
    %148 = arith.addf %142, %147 : vector<8x512xf32>
    %cst_13 = arith.constant dense<0.000000e+00> : vector<8xf32>
    %149 = vector.multi_reduction <add>, %148, %cst_13 [1] : vector<8x512xf32> to vector<8xf32>
    %150 = vector.shape_cast %149 : vector<8xf32> to vector<8x1xf32>
    %cst_14 = arith.constant 5.120000e+02 : f32
    %151 = vector.broadcast %cst_14 : f32 to vector<8x1xf32>
    %152 = arith.divf %150, %151 : vector<8x1xf32>
    %153 = vector.broadcast %152 : vector<8x1xf32> to vector<8x512xf32>
    %154 = arith.subf %148, %153 : vector<8x512xf32>
    %155 = arith.mulf %154, %154 : vector<8x512xf32>
    %cst_15 = arith.constant dense<0.000000e+00> : vector<8xf32>
    %156 = vector.multi_reduction <add>, %155, %cst_15 [1] : vector<8x512xf32> to vector<8xf32>
    %157 = vector.shape_cast %156 : vector<8xf32> to vector<8x1xf32>
    %cst_16 = arith.constant 5.120000e+02 : f32
    %158 = vector.broadcast %cst_16 : f32 to vector<8x1xf32>
    %159 = arith.divf %157, %158 : vector<8x1xf32>
    %cst_17 = arith.constant 1.00195694 : f32
    %160 = vector.broadcast %cst_17 : f32 to vector<8x1xf32>
    %161 = arith.mulf %159, %160 : vector<8x1xf32>
    %cst_18 = arith.constant 9.99999974E-6 : f32
    %162 = vector.broadcast %cst_18 : f32 to vector<8x1xf32>
    %163 = arith.addf %161, %162 : vector<8x1xf32>
    %164 = math.rsqrt %163 : vector<8x1xf32>
    %165 = arith.mulf %11, %164 : vector<8x1xf32>
    %166 = vector.broadcast %165 : vector<8x1xf32> to vector<8x512xf32>
    %167 = arith.mulf %154, %166 : vector<8x512xf32>
    %168 = vector.broadcast %12 : vector<8x1xf32> to vector<8x512xf32>
    %169 = arith.addf %167, %168 : vector<8x512xf32>
    %cst_19 = arith.constant dense<0.000000e+00> : vector<8x32xf32>
    %170 = tpu.matmul %169, %1, %cst_19 {dimension_numbers = #tpu.dot_dimension_numbers<[1], [1], [0], [0], [0, 0, 1, 0], [], []>} : vector<8x512xf32>, vector<32x512xf32>, vector<8x32xf32> -> vector<8x32xf32>
    %cst_20 = arith.constant dense<0.000000e+00> : vector<8xf32>
    %171 = vector.multi_reduction <add>, %170, %cst_20 [1] : vector<8x32xf32> to vector<8xf32>
    %172 = vector.shape_cast %171 : vector<8xf32> to vector<8x1xf32>
    %cst_21 = arith.constant 3.200000e+01 : f32
    %173 = vector.broadcast %cst_21 : f32 to vector<8x1xf32>
    %174 = arith.divf %172, %173 : vector<8x1xf32>
    %175 = vector.broadcast %174 : vector<8x1xf32> to vector<8x32xf32>
    %176 = arith.subf %170, %175 : vector<8x32xf32>
    %177 = arith.mulf %176, %176 : vector<8x32xf32>
    %cst_22 = arith.constant dense<0.000000e+00> : vector<8xf32>
    %178 = vector.multi_reduction <add>, %177, %cst_22 [1] : vector<8x32xf32> to vector<8xf32>
    %179 = vector.shape_cast %178 : vector<8xf32> to vector<8x1xf32>
    %cst_23 = arith.constant 3.200000e+01 : f32
    %180 = vector.broadcast %cst_23 : f32 to vector<8x1xf32>
    %181 = arith.divf %179, %180 : vector<8x1xf32>
    %cst_24 = arith.constant 2.560000e-03 : f32
    %182 = vector.broadcast %cst_24 : f32 to vector<8x1xf32>
    %183 = arith.addf %181, %182 : vector<8x1xf32>
    %184 = math.rsqrt %183 : vector<8x1xf32>
    %185 = arith.mulf %13, %184 : vector<8x1xf32>
    %186 = vector.broadcast %185 : vector<8x1xf32> to vector<8x32xf32>
    %187 = arith.mulf %176, %186 : vector<8x32xf32>
    %188 = vector.broadcast %14 : vector<8x1xf32> to vector<8x32xf32>
    %189 = arith.addf %187, %188 : vector<8x32xf32>
    %190 = arith.negf %189 : vector<8x32xf32>
    %191 = math.exp %190 : vector<8x32xf32>
    %cst_25 = arith.constant 1.000000e+00 : f32
    %192 = vector.broadcast %cst_25 : f32 to vector<8x32xf32>
    %193 = arith.addf %192, %191 : vector<8x32xf32>
    %194 = arith.divf %192, %193 : vector<8x32xf32>
    %195 = arith.mulf %189, %194 : vector<8x32xf32>
    %cst_26 = arith.constant dense<0.000000e+00> : vector<8x512xf32>
    %196 = tpu.matmul %195, %1, %cst_26 {dimension_numbers = #tpu.dot_dimension_numbers<[1], [0], [0], [1], [0, 0, 1, 1], [], []>} : vector<8x32xf32>, vector<32x512xf32>, vector<8x512xf32> -> vector<8x512xf32>
    %197 = arith.addf %169, %196 : vector<8x512xf32>
    %198 = vector.extract_strided_slice %197 {offsets = [0, 0], sizes = [8, 256], strides = [1, 1]} : vector<8x512xf32> to vector<8x256xf32>
    %c0_27 = arith.constant 0 : index
    %c0_28 = arith.constant 0 : index
    %c0_29 = arith.constant 0 : index
    %199 = vector.load %arg3[%c0_27, %c0_28, %c0_29] : memref<2x8x256xf32, #tpu.memory_space<vmem>>, vector<1x8x256xf32>
    %200 = vector.shape_cast %199 : vector<1x8x256xf32> to vector<8x256xf32>
    %201 = vector.shape_cast %198 : vector<8x256xf32> to vector<1x8x256xf32>
    tpu.vector_store %arg3[%c0_27, %c0_28, %c0_29], %201 {strides = array<i32>} : memref<2x8x256xf32, #tpu.memory_space<vmem>>, vector<1x8x256xf32>,
    %202 = vector.extract_strided_slice %197 {offsets = [0, 256], sizes = [8, 256], strides = [1, 1]} : vector<8x512xf32> to vector<8x256xf32>
    %c1_30 = arith.constant 1 : index
    %c0_31 = arith.constant 0 : index
    %c0_32 = arith.constant 0 : index
    %203 = vector.load %arg3[%c1_30, %c0_31, %c0_32] : memref<2x8x256xf32, #tpu.memory_space<vmem>>, vector<1x8x256xf32>
    %204 = vector.shape_cast %203 : vector<1x8x256xf32> to vector<8x256xf32>
    %205 = vector.shape_cast %202 : vector<8x256xf32> to vector<1x8x256xf32>
    tpu.vector_store %arg3[%c1_30, %c0_31, %c0_32], %205 {strides = array<i32>} : memref<2x8x256xf32, #tpu.memory_space<vmem>>, vector<1x8x256xf32>,
    return
  }
}

</mosaic_0001>

<llo_original>
// kernel: bcresblock_forward.1
$region0: #{bcresblock_forward.1}
  #allocation0 [shape = 'u32[]', space=smem, size = 0x4, offset = 0x4, fixed_abs, tag = 'smem constant byte address 0x4 - core index']
  #allocation1 [shape = 'u32[144,128]{1,0:T(1,128)}', space=vmem, size = 0x12000, scoped, tag = 'internal scratch']
  %s0 = inlined_call_operand.vmem [shape: f32[2,4,256], index: 0, kind: input, shape index: {}]
  %s1 = inlined_call_operand.vmem [shape: f32[8,128], index: 1, kind: input, shape index: {}]
  %s2 = inlined_call_operand.vmem [shape: f32[40,512], index: 2, kind: input, shape index: {}]
  %s3 = inlined_call_operand.vmem [shape: f32[2,8,256], index: 3, kind: output, shape index: {}]
  %s4 = sld [smem:[#allocation0]]
  $region22: #{bcresblock_forward.1} parent=0
    _
  %s6 = ssub.s32 1, %s4
  %s7 = scalar_select 0, %s6, %s4
  // Predicated region
  $region2: #{bcresblock_forward.1} parent=0 // pred_check
    _
  $region3: #{bcresblock_forward.1} parent=0 // pred_check_branch
    %9 = sbr.rel (0) target = $region5
  $region4: #{bcresblock_forward.1} parent=0 // pred_region
    _
  $region5: #{bcresblock_forward.1} parent=0 // pred_fallthru
    _
  // Predicated region
  $region6: #{bcresblock_forward.1} parent=0 // pred_check
    _
  $region7: #{bcresblock_forward.1} parent=0 // pred_check_branch
    %11 = sbr.rel (0) target = $region9
  $region8: #{bcresblock_forward.1} parent=0 // pred_region
    _
  $region9: #{bcresblock_forward.1} parent=0 // pred_fallthru
    _
  // Predicated region
  $region10: #{bcresblock_forward.1} parent=0 // pred_check
    _
  $region11: #{bcresblock_forward.1} parent=0 // pred_check_branch
    %13 = sbr.rel (0) target = $region13
  $region12: #{bcresblock_forward.1} parent=0 // pred_region
    _
  $region13: #{bcresblock_forward.1} parent=0 // pred_fallthru
    _
  %v14 = vld [vmem:[%s2] sm:$0xff]
  %v15 = vld [vmem:[%s2 + $0x8] sm:$0xff]
  %v16 = vld [vmem:[%s2 + $0x10] sm:$0xff]
  %v17 = vld [vmem:[%s2 + $0x18] sm:$0xff]
  %v18 = vld [vmem:[%s2 + $0x20] sm:$0xff]
  %v19 = vld [vmem:[%s2 + $0x28] sm:$0xff]
  %v20 = vld [vmem:[%s2 + $0x30] sm:$0xff]
  %v21 = vld [vmem:[%s2 + $0x38] sm:$0xff]
  %v22 = vld [vmem:[%s2 + $0x40] sm:$0xff]
  %v23 = vld [vmem:[%s2 + $0x48] sm:$0xff]
  %v24 = vld [vmem:[%s2 + $0x50] sm:$0xff]
  %v25 = vld [vmem:[%s2 + $0x58] sm:$0xff]
  %v26 = vld [vmem:[%s2 + $0x60] sm:$0xff]
  %v27 = vld [vmem:[%s2 + $0x68] sm:$0xff]
  %v28 = vld [vmem:[%s2 + $0x70] sm:$0xff]
  %v29 = vld [vmem:[%s2 + $0x78] sm:$0xff]
  %v30 = vld [vmem:[%s2 + $0x80] sm:$0xff]
  %v31 = vld [vmem:[%s2 + $0x88] sm:$0xff]
  %v32 = vld [vmem:[%s2 + $0x90] sm:$0xff]
  %v33 = vld [vmem:[%s2 + $0x98] sm:$0xff]
  %v34 = vld [vmem:[%s1] sm:$0xff]
  %v35 = vld [vmem:[%s0] sm:$0xff]
  %s36 = scalar_lea.vmem %s0, 8
  %v37 = vld [vmem:[%s36] sm:$0xff]
  %v39 = vcombine.high %v35, %v35
  %v42 = vcombine.high %v37, %v37
  %45 = vset.pattern.permute.xlu0 16
  %46 = vperm.xlu0 %45, %v34
  %v47 = vpop.permute.xlu0 %46
  %v49 = vlaneseq
  %v50 = vshrl.u32 %v49, 7
  %v51 = vsub.s32 0, %v50
  %v52 = vrot.slane %v35, %v51
  %v53 = vlaneseq
  %v54 = vshrl.u32 %v53, 7
  %v55 = vsub.s32 0, %v54
  %v56 = vrot.slane %v39, %v55
  %v57 = vlaneseq
  %v58 = vshrl.u32 %v57, 7
  %v59 = vsub.s32 0, %v58
  %v60 = vrot.slane %v37, %v59
  %v61 = vlaneseq
  %v62 = vshrl.u32 %v61, 7
  %v63 = vsub.s32 0, %v62
  %v64 = vrot.slane %v42, %v63
  %v65 = vmul.f32 %v47, %v52
  %v66 = vmul.f32 %v47, %v56
  %v67 = vmul.f32 %v47, %v60
  %v68 = vmul.f32 %v47, %v64
  %69 = vset.pattern.permute.xlu0 32
  %70 = vperm.xlu0 %69, %v34
  %v71 = vpop.permute.xlu0 %70
  %v73 = vadd.f32 %v71, %v65
  %v74 = vadd.f32 %v71, %v66
  %v75 = vadd.f32 %v71, %v67
  %v76 = vadd.f32 %v71, %v68
  %77 = vset.pattern.permute.xlu0 17
  %78 = vperm.xlu0 %77, %v34
  %v79 = vpop.permute.xlu0 %78
  %v81 = vlaneseq
  %v82 = vshrl.u32 %v81, 7
  %v83 = vsub.s32 1, %v82
  %v84 = vrot.slane %v35, %v83
  %v85 = vlaneseq
  %v86 = vshrl.u32 %v85, 7
  %v87 = vsub.s32 1, %v86
  %v88 = vrot.slane %v39, %v87
  %v89 = vlaneseq
  %v90 = vshrl.u32 %v89, 7
  %v91 = vsub.s32 1, %v90
  %v92 = vrot.slane %v37, %v91
  %v93 = vlaneseq
  %v94 = vshrl.u32 %v93, 7
  %v95 = vsub.s32 1, %v94
  %v96 = vrot.slane %v42, %v95
  %v97 = vmul.f32 %v79, %v84
  %v98 = vmul.f32 %v79, %v88
  %v99 = vmul.f32 %v79, %v92
  %v100 = vmul.f32 %v79, %v96
  %v101 = vadd.f32 %v73, %v97
  %v102 = vadd.f32 %v74, %v98
  %v103 = vadd.f32 %v75, %v99
  %v104 = vadd.f32 %v76, %v100
  %105 = vset.pattern.permute.xlu0 18
  %106 = vperm.xlu0 %105, %v34
  %v107 = vpop.permute.xlu0 %106
  %v109 = vlaneseq
  %v110 = vshrl.u32 %v109, 7
  %v111 = vsub.s32 2, %v110
  %v112 = vrot.slane %v35, %v111
  %v113 = vlaneseq
  %v114 = vshrl.u32 %v113, 7
  %v115 = vsub.s32 2, %v114
  %v116 = vrot.slane %v39, %v115
  %v117 = vlaneseq
  %v118 = vshrl.u32 %v117, 7
  %v119 = vsub.s32 2, %v118
  %v120 = vrot.slane %v37, %v119
  %v121 = vlaneseq
  %v122 = vshrl.u32 %v121, 7
  %v123 = vsub.s32 2, %v122
  %v124 = vrot.slane %v42, %v123
  %v125 = vmul.f32 %v107, %v112
  %v126 = vmul.f32 %v107, %v116
  %v127 = vmul.f32 %v107, %v120
  %v128 = vmul.f32 %v107, %v124
  %v129 = vadd.f32 %v101, %v125
  %v130 = vadd.f32 %v102, %v126
  %v131 = vadd.f32 %v103, %v127
  %v132 = vadd.f32 %v104, %v128
  %133 = vset.pattern.permute.xlu0 19
  %134 = vperm.xlu0 %133, %v34
  %v135 = vpop.permute.xlu0 %134
  %v137 = vlaneseq
  %v138 = vshrl.u32 %v137, 7
  %v139 = vsub.s32 3, %v138
  %v140 = vrot.slane %v35, %v139
  %v141 = vlaneseq
  %v142 = vshrl.u32 %v141, 7
  %v143 = vsub.s32 3, %v142
  %v144 = vrot.slane %v39, %v143
  %v145 = vlaneseq
  %v146 = vshrl.u32 %v145, 7
  %v147 = vsub.s32 3, %v146
  %v148 = vrot.slane %v37, %v147
  %v149 = vlaneseq
  %v150 = vshrl.u32 %v149, 7
  %v151 = vsub.s32 3, %v150
  %v152 = vrot.slane %v42, %v151
  %v153 = vmul.f32 %v135, %v140
  %v154 = vmul.f32 %v135, %v144
  %v155 = vmul.f32 %v135, %v148
  %v156 = vmul.f32 %v135, %v152
  %v157 = vadd.f32 %v129, %v153
  %v158 = vadd.f32 %v130, %v154
  %v159 = vadd.f32 %v131, %v155
  %v160 = vadd.f32 %v132, %v156
  %vm161 = vcmask 1043456
  %v162 = vsel %vm161, %v157, 0.0
  %v163 = vsel %vm161, %v158, 0.0
  %v164 = vadd.f32 %v162, %v163
  %v165 = vsel %vm161, %v159, 0.0
  %v166 = vadd.f32 %v164, %v165
  %v167 = vsel %vm161, %v160, 0.0
  %v168 = vadd.f32 %v166, %v167
  %169 = vadd.xlane.f32.xlu0 %v168
  %v170 = vpop.xlane.xlu0 %169
  %v171 = vrcp.pop 512.0
  %v172 = vmul.f32 %v170, %v171
  %v173 = vsub.f32 %v157, %v172
  %v174 = vsub.f32 %v158, %v172
  %v175 = vsub.f32 %v159, %v172
  %v176 = vsub.f32 %v160, %v172
  %v177 = vmul.f32 %v173, %v173
  %v178 = vmul.f32 %v174, %v174
  %v179 = vmul.f32 %v175, %v175
  %v180 = vmul.f32 %v176, %v176
  %v181 = vsel %vm161, %v177, 0.0
  %v182 = vsel %vm161, %v178, 0.0
  %v183 = vadd.f32 %v181, %v182
  %v184 = vsel %vm161, %v179, 0.0
  %v185 = vadd.f32 %v183, %v184
  %v186 = vsel %vm161, %v180, 0.0
  %v187 = vadd.f32 %v185, %v186
  %188 = vadd.xlane.f32.xlu0 %v187
  %v189 = vpop.xlane.xlu0 %188
  %v190 = vmul.f32 %v189, %v171
  %v191 = vadd.f32 %v190, 1e-05
  %v192 = vrsqrt.pop %v191
  %v193 = vmul.f32 %v34, %v192
  %195 = vset.pattern.permute.xlu0 33
  %196 = vperm.xlu0 %195, %v193
  %v197 = vpop.permute.xlu0 %196
  %v199 = vmul.f32 %v173, %v197
  %v200 = vmul.f32 %v174, %v197
  %v201 = vmul.f32 %v175, %v197
  %v202 = vmul.f32 %v176, %v197
  %203 = vset.pattern.permute.xlu0 34
  %204 = vperm.xlu0 %203, %v34
  %v205 = vpop.permute.xlu0 %204
  %v207 = vadd.f32 %v199, %v205
  %v208 = vadd.f32 %v200, %v205
  %v209 = vadd.f32 %v201, %v205
  %v210 = vadd.f32 %v202, %v205
  %v211 = vmax.f32 %v207, 0.0
  %v212 = vmax.f32 %v208, 0.0
  %v213 = vmax.f32 %v209, 0.0
  %v214 = vmax.f32 %v210, 0.0
  %216 = vrot.lane.b32.xlu0 %v214, 16
  %v217 = vpop.permute.xlu0 %216
  %222 = vrot.lane.b32.xlu0 %v211, 16
  %v223 = vpop.permute.xlu0 %222
  %224 = vrot.lane.b32.xlu0 %v212, 16
  %v225 = vpop.permute.xlu0 %224
  %226 = vrot.lane.b32.xlu0 %v213, 16
  %v227 = vpop.permute.xlu0 %226
  %vm228 = vcmask 130048
  %v229 = vsel %vm228, %v223, %v225
  %v230 = vsel %vm228, %v225, %v227
  %v231 = vsel %vm228, %v227, %v217
  %v236 = vsel %vm228, %v217, %v223
  %v237 = vlaneseq
  %v238 = vshrl.u32 %v237, 7
  %v239 = vsub.s32 0, %v238
  %v240 = vrot.slane %v30, %v239
  %v241 = vlaneseq
  %v242 = vshrl.u32 %v241, 7
  %v243 = vsub.s32 0, %v242
  %v244 = vrot.slane %v31, %v243
  %v245 = vlaneseq
  %v246 = vshrl.u32 %v245, 7
  %v247 = vsub.s32 0, %v246
  %v248 = vrot.slane %v32, %v247
  %v249 = vlaneseq
  %v250 = vshrl.u32 %v249, 7
  %v251 = vsub.s32 0, %v250
  %v252 = vrot.slane %v33, %v251
  %v253 = vmul.f32 %v236, %v240
  %v254 = vmul.f32 %v229, %v244
  %v255 = vmul.f32 %v230, %v248
  %v256 = vmul.f32 %v231, %v252
  %257 = vrot.lane.b32.xlu0 %v211, 112
  %v258 = vpop.permute.xlu0 %257
  %259 = vrot.lane.b32.xlu0 %v212, 112
  %v260 = vpop.permute.xlu0 %259
  %261 = vrot.lane.b32.xlu0 %v213, 112
  %v262 = vpop.permute.xlu0 %261
  %263 = vrot.lane.b32.xlu0 %v214, 112
  %v264 = vpop.permute.xlu0 %263
  %vm265 = vcmask 916480
  %v266 = vsel %vm265, %v258, %v260
  %v267 = vsel %vm265, %v260, %v262
  %v268 = vsel %vm265, %v262, %v264
  %v274 = vsel %vm265, %v264, %v258
  %v275 = vlaneseq
  %v276 = vshrl.u32 %v275, 7
  %v277 = vsub.s32 1, %v276
  %v278 = vrot.slane %v30, %v277
  %v279 = vlaneseq
  %v280 = vshrl.u32 %v279, 7
  %v281 = vsub.s32 1, %v280
  %v282 = vrot.slane %v31, %v281
  %v283 = vlaneseq
  %v284 = vshrl.u32 %v283, 7
  %v285 = vsub.s32 1, %v284
  %v286 = vrot.slane %v32, %v285
  %v287 = vlaneseq
  %v288 = vshrl.u32 %v287, 7
  %v289 = vsub.s32 1, %v288
  %v290 = vrot.slane %v33, %v289
  %v291 = vmul.f32 %v266, %v278
  %v292 = vmul.f32 %v267, %v282
  %v293 = vmul.f32 %v268, %v286
  %v294 = vmul.f32 %v274, %v290
  %295 = vset.pattern.permute.xlu0 0
  %296 = vperm.xlu0 %295, %v34
  %v297 = vpop.permute.xlu0 %296
  %v299 = vlaneseq
  %v300 = vshrl.u32 %v299, 7
  %v301 = vsub.s32 0, %v300
  %v302 = vrot.slane %v253, %v301
  %v303 = vlaneseq
  %v304 = vshrl.u32 %v303, 7
  %v305 = vsub.s32 0, %v304
  %v306 = vrot.slane %v254, %v305
  %v307 = vlaneseq
  %v308 = vshrl.u32 %v307, 7
  %v309 = vsub.s32 0, %v308
  %v310 = vrot.slane %v255, %v309
  %v311 = vlaneseq
  %v312 = vshrl.u32 %v311, 7
  %v313 = vsub.s32 0, %v312
  %v314 = vrot.slane %v256, %v313
  %v315 = vmul.f32 %v297, %v302
  %v316 = vmul.f32 %v297, %v306
  %v317 = vmul.f32 %v297, %v310
  %v318 = vmul.f32 %v297, %v314
  %319 = vset.pattern.permute.xlu0 35
  %320 = vperm.xlu0 %319, %v34
  %v321 = vpop.permute.xlu0 %320
  %v323 = vadd.f32 %v321, %v315
  %v324 = vadd.f32 %v321, %v316
  %v325 = vadd.f32 %v321, %v317
  %v326 = vadd.f32 %v321, %v318
  %327 = vset.pattern.permute.xlu0 1
  %328 = vperm.xlu0 %327, %v34
  %v329 = vpop.permute.xlu0 %328
  %v331 = vlaneseq
  %v332 = vshrl.u32 %v331, 7
  %v333 = vsub.s32 1, %v332
  %v334 = vrot.slane %v253, %v333
  %v335 = vlaneseq
  %v336 = vshrl.u32 %v335, 7
  %v337 = vsub.s32 1, %v336
  %v338 = vrot.slane %v254, %v337
  %v339 = vlaneseq
  %v340 = vshrl.u32 %v339, 7
  %v341 = vsub.s32 1, %v340
  %v342 = vrot.slane %v255, %v341
  %v343 = vlaneseq
  %v344 = vshrl.u32 %v343, 7
  %v345 = vsub.s32 1, %v344
  %v346 = vrot.slane %v256, %v345
  %v347 = vmul.f32 %v329, %v334
  %v348 = vmul.f32 %v329, %v338
  %v349 = vmul.f32 %v329, %v342
  %v350 = vmul.f32 %v329, %v346
  %v351 = vadd.f32 %v323, %v347
  %v352 = vadd.f32 %v324, %v348
  %v353 = vadd.f32 %v325, %v349
  %v354 = vadd.f32 %v326, %v350
  %355 = vset.pattern.permute.xlu0 2
  %356 = vperm.xlu0 %355, %v34
  %v357 = vpop.permute.xlu0 %356
  %v359 = vlaneseq
  %v360 = vshrl.u32 %v359, 7
  %v361 = vsub.s32 2, %v360
  %v362 = vrot.slane %v253, %v361
  %v363 = vlaneseq
  %v364 = vshrl.u32 %v363, 7
  %v365 = vsub.s32 2, %v364
  %v366 = vrot.slane %v254, %v365
  %v367 = vlaneseq
  %v368 = vshrl.u32 %v367, 7
  %v369 = vsub.s32 2, %v368
  %v370 = vrot.slane %v255, %v369
  %v371 = vlaneseq
  %v372 = vshrl.u32 %v371, 7
  %v373 = vsub.s32 2, %v372
  %v374 = vrot.slane %v256, %v373
  %v375 = vmul.f32 %v357, %v362
  %v376 = vmul.f32 %v357, %v366
  %v377 = vmul.f32 %v357, %v370
  %v378 = vmul.f32 %v357, %v374
  %v379 = vadd.f32 %v351, %v375
  %v380 = vadd.f32 %v352, %v376
  %v381 = vadd.f32 %v353, %v377
  %v382 = vadd.f32 %v354, %v378
  %383 = vset.pattern.permute.xlu0 3
  %384 = vperm.xlu0 %383, %v34
  %v385 = vpop.permute.xlu0 %384
  %v387 = vlaneseq
  %v388 = vshrl.u32 %v387, 7
  %v389 = vsub.s32 3, %v388
  %v390 = vrot.slane %v253, %v389
  %v391 = vlaneseq
  %v392 = vshrl.u32 %v391, 7
  %v393 = vsub.s32 3, %v392
  %v394 = vrot.slane %v254, %v393
  %v395 = vlaneseq
  %v396 = vshrl.u32 %v395, 7
  %v397 = vsub.s32 3, %v396
  %v398 = vrot.slane %v255, %v397
  %v399 = vlaneseq
  %v400 = vshrl.u32 %v399, 7
  %v401 = vsub.s32 3, %v400
  %v402 = vrot.slane %v256, %v401
  %v403 = vmul.f32 %v385, %v390
  %v404 = vmul.f32 %v385, %v394
  %v405 = vmul.f32 %v385, %v398
  %v406 = vmul.f32 %v385, %v402
  %v407 = vadd.f32 %v379, %v403
  %v408 = vadd.f32 %v380, %v404
  %v409 = vadd.f32 %v381, %v405
  %v410 = vadd.f32 %v382, %v406
  %411 = vset.pattern.permute.xlu0 4
  %412 = vperm.xlu0 %411, %v34
  %v413 = vpop.permute.xlu0 %412
  %v415 = vlaneseq
  %v416 = vshrl.u32 %v415, 7
  %v417 = vsub.s32 0, %v416
  %v418 = vrot.slane %v211, %v417
  %v419 = vlaneseq
  %v420 = vshrl.u32 %v419, 7
  %v421 = vsub.s32 0, %v420
  %v422 = vrot.slane %v212, %v421
  %v423 = vlaneseq
  %v424 = vshrl.u32 %v423, 7
  %v425 = vsub.s32 0, %v424
  %v426 = vrot.slane %v213, %v425
  %v427 = vlaneseq
  %v428 = vshrl.u32 %v427, 7
  %v429 = vsub.s32 0, %v428
  %v430 = vrot.slane %v214, %v429
  %v431 = vmul.f32 %v413, %v418
  %v432 = vmul.f32 %v413, %v422
  %v433 = vmul.f32 %v413, %v426
  %v434 = vmul.f32 %v413, %v430
  %v435 = vadd.f32 %v407, %v431
  %v436 = vadd.f32 %v408, %v432
  %v437 = vadd.f32 %v409, %v433
  %v438 = vadd.f32 %v410, %v434
  %439 = vset.pattern.permute.xlu0 5
  %440 = vperm.xlu0 %439, %v34
  %v441 = vpop.permute.xlu0 %440
  %v443 = vlaneseq
  %v444 = vshrl.u32 %v443, 7
  %v445 = vsub.s32 1, %v444
  %v446 = vrot.slane %v211, %v445
  %v447 = vlaneseq
  %v448 = vshrl.u32 %v447, 7
  %v449 = vsub.s32 1, %v448
  %v450 = vrot.slane %v212, %v449
  %v451 = vlaneseq
  %v452 = vshrl.u32 %v451, 7
  %v453 = vsub.s32 1, %v452
  %v454 = vrot.slane %v213, %v453
  %v455 = vlaneseq
  %v456 = vshrl.u32 %v455, 7
  %v457 = vsub.s32 1, %v456
  %v458 = vrot.slane %v214, %v457
  %v459 = vmul.f32 %v441, %v446
  %v460 = vmul.f32 %v441, %v450
  %v461 = vmul.f32 %v441, %v454
  %v462 = vmul.f32 %v441, %v458
  %v463 = vadd.f32 %v435, %v459
  %v464 = vadd.f32 %v436, %v460
  %v465 = vadd.f32 %v437, %v461
  %v466 = vadd.f32 %v438, %v462
  %467 = vset.pattern.permute.xlu0 6
  %468 = vperm.xlu0 %467, %v34
  %v469 = vpop.permute.xlu0 %468
  %v471 = vlaneseq
  %v472 = vshrl.u32 %v471, 7
  %v473 = vsub.s32 2, %v472
  %v474 = vrot.slane %v211, %v473
  %v475 = vlaneseq
  %v476 = vshrl.u32 %v475, 7
  %v477 = vsub.s32 2, %v476
  %v478 = vrot.slane %v212, %v477
  %v479 = vlaneseq
  %v480 = vshrl.u32 %v479, 7
  %v481 = vsub.s32 2, %v480
  %v482 = vrot.slane %v213, %v481
  %v483 = vlaneseq
  %v484 = vshrl.u32 %v483, 7
  %v485 = vsub.s32 2, %v484
  %v486 = vrot.slane %v214, %v485
  %v487 = vmul.f32 %v469, %v474
  %v488 = vmul.f32 %v469, %v478
  %v489 = vmul.f32 %v469, %v482
  %v490 = vmul.f32 %v469, %v486
  %v491 = vadd.f32 %v463, %v487
  %v492 = vadd.f32 %v464, %v488
  %v493 = vadd.f32 %v465, %v489
  %v494 = vadd.f32 %v466, %v490
  %495 = vset.pattern.permute.xlu0 7
  %496 = vperm.xlu0 %495, %v34
  %v497 = vpop.permute.xlu0 %496
  %v499 = vlaneseq
  %v500 = vshrl.u32 %v499, 7
  %v501 = vsub.s32 3, %v500
  %v502 = vrot.slane %v211, %v501
  %v503 = vlaneseq
  %v504 = vshrl.u32 %v503, 7
  %v505 = vsub.s32 3, %v504
  %v506 = vrot.slane %v212, %v505
  %v507 = vlaneseq
  %v508 = vshrl.u32 %v507, 7
  %v509 = vsub.s32 3, %v508
  %v510 = vrot.slane %v213, %v509
  %v511 = vlaneseq
  %v512 = vshrl.u32 %v511, 7
  %v513 = vsub.s32 3, %v512
  %v514 = vrot.slane %v214, %v513
  %v515 = vmul.f32 %v497, %v502
  %v516 = vmul.f32 %v497, %v506
  %v517 = vmul.f32 %v497, %v510
  %v518 = vmul.f32 %v497, %v514
  %v519 = vadd.f32 %v491, %v515
  %v520 = vadd.f32 %v492, %v516
  %v521 = vadd.f32 %v493, %v517
  %v522 = vadd.f32 %v494, %v518
  %523 = vset.pattern.permute.xlu0 8
  %524 = vperm.xlu0 %523, %v34
  %v525 = vpop.permute.xlu0 %524
  %v527 = vlaneseq
  %v528 = vshrl.u32 %v527, 7
  %v529 = vsub.s32 0, %v528
  %v530 = vrot.slane %v291, %v529
  %v531 = vlaneseq
  %v532 = vshrl.u32 %v531, 7
  %v533 = vsub.s32 0, %v532
  %v534 = vrot.slane %v292, %v533
  %v535 = vlaneseq
  %v536 = vshrl.u32 %v535, 7
  %v537 = vsub.s32 0, %v536
  %v538 = vrot.slane %v293, %v537
  %v539 = vlaneseq
  %v540 = vshrl.u32 %v539, 7
  %v541 = vsub.s32 0, %v540
  %v542 = vrot.slane %v294, %v541
  %v543 = vmul.f32 %v525, %v530
  %v544 = vmul.f32 %v525, %v534
  %v545 = vmul.f32 %v525, %v538
  %v546 = vmul.f32 %v525, %v542
  %v547 = vadd.f32 %v519, %v543
  %v548 = vadd.f32 %v520, %v544
  %v549 = vadd.f32 %v521, %v545
  %v550 = vadd.f32 %v522, %v546
  %551 = vset.pattern.permute.xlu0 9
  %552 = vperm.xlu0 %551, %v34
  %v553 = vpop.permute.xlu0 %552
  %v555 = vlaneseq
  %v556 = vshrl.u32 %v555, 7
  %v557 = vsub.s32 1, %v556
  %v558 = vrot.slane %v291, %v557
  %v559 = vlaneseq
  %v560 = vshrl.u32 %v559, 7
  %v561 = vsub.s32 1, %v560
  %v562 = vrot.slane %v292, %v561
  %v563 = vlaneseq
  %v564 = vshrl.u32 %v563, 7
  %v565 = vsub.s32 1, %v564
  %v566 = vrot.slane %v293, %v565
  %v567 = vlaneseq
  %v568 = vshrl.u32 %v567, 7
  %v569 = vsub.s32 1, %v568
  %v570 = vrot.slane %v294, %v569
  %v571 = vmul.f32 %v553, %v558
  %v572 = vmul.f32 %v553, %v562
  %v573 = vmul.f32 %v553, %v566
  %v574 = vmul.f32 %v553, %v570
  %v575 = vadd.f32 %v547, %v571
  %v576 = vadd.f32 %v548, %v572
  %v577 = vadd.f32 %v549, %v573
  %v578 = vadd.f32 %v550, %v574
  %579 = vset.pattern.permute.xlu0 10
  %580 = vperm.xlu0 %579, %v34
  %v581 = vpop.permute.xlu0 %580
  %v583 = vlaneseq
  %v584 = vshrl.u32 %v583, 7
  %v585 = vsub.s32 2, %v584
  %v586 = vrot.slane %v291, %v585
  %v587 = vlaneseq
  %v588 = vshrl.u32 %v587, 7
  %v589 = vsub.s32 2, %v588
  %v590 = vrot.slane %v292, %v589
  %v591 = vlaneseq
  %v592 = vshrl.u32 %v591, 7
  %v593 = vsub.s32 2, %v592
  %v594 = vrot.slane %v293, %v593
  %v595 = vlaneseq
  %v596 = vshrl.u32 %v595, 7
  %v597 = vsub.s32 2, %v596
  %v598 = vrot.slane %v294, %v597
  %v599 = vmul.f32 %v581, %v586
  %v600 = vmul.f32 %v581, %v590
  %v601 = vmul.f32 %v581, %v594
  %v602 = vmul.f32 %v581, %v598
  %v603 = vadd.f32 %v575, %v599
  %v604 = vadd.f32 %v576, %v600
  %v605 = vadd.f32 %v577, %v601
  %v606 = vadd.f32 %v578, %v602
  %607 = vset.pattern.permute.xlu0 11
  %608 = vperm.xlu0 %607, %v34
  %v609 = vpop.permute.xlu0 %608
  %v611 = vlaneseq
  %v612 = vshrl.u32 %v611, 7
  %v613 = vsub.s32 3, %v612
  %v614 = vrot.slane %v291, %v613
  %v615 = vlaneseq
  %v616 = vshrl.u32 %v615, 7
  %v617 = vsub.s32 3, %v616
  %v618 = vrot.slane %v292, %v617
  %v619 = vlaneseq
  %v620 = vshrl.u32 %v619, 7
  %v621 = vsub.s32 3, %v620
  %v622 = vrot.slane %v293, %v621
  %v623 = vlaneseq
  %v624 = vshrl.u32 %v623, 7
  %v625 = vsub.s32 3, %v624
  %v626 = vrot.slane %v294, %v625
  %v627 = vmul.f32 %v609, %v614
  %v628 = vmul.f32 %v609, %v618
  %v629 = vmul.f32 %v609, %v622
  %v630 = vmul.f32 %v609, %v626
  %v631 = vadd.f32 %v603, %v627
  %v632 = vadd.f32 %v604, %v628
  %v633 = vadd.f32 %v605, %v629
  %v634 = vadd.f32 %v606, %v630
  %v635 = vadd.f32 %v631, %v632
  %v636 = vadd.f32 %v635, %v633
  %v637 = vadd.f32 %v636, %v634
  %638 = vadd.xlane.f32.xlu0 %v637
  %v639 = vpop.xlane.xlu0 %638
  %v640 = vmul.f32 %v639, %v171
  %v641 = vsub.f32 %v631, %v640
  %v642 = vsub.f32 %v632, %v640
  %v643 = vsub.f32 %v633, %v640
  %v644 = vsub.f32 %v634, %v640
  %v645 = vmul.f32 %v641, %v641
  %v646 = vmul.f32 %v642, %v642
  %v647 = vmul.f32 %v643, %v643
  %v648 = vmul.f32 %v644, %v644
  %v649 = vadd.f32 %v645, %v646
  %v650 = vadd.f32 %v649, %v647
  %v651 = vadd.f32 %v650, %v648
  %652 = vadd.xlane.f32.xlu0 %v651
  %v653 = vpop.xlane.xlu0 %652
  %v654 = vmul.f32 %v653, %v171
  %v655 = vmul.f32 %v654, 1.0019569
  %v656 = vadd.f32 %v655, 1e-05
  %v657 = vrsqrt.pop %v656
  %v658 = vmul.f32 %v34, %v657
  %660 = vset.pattern.permute.xlu0 36
  %661 = vperm.xlu0 %660, %v658
  %v662 = vpop.permute.xlu0 %661
  %v664 = vmul.f32 %v641, %v662
  %v665 = vmul.f32 %v642, %v662
  %v666 = vmul.f32 %v643, %v662
  %v667 = vmul.f32 %v644, %v662
  %668 = vset.pattern.permute.xlu0 37
  %669 = vperm.xlu0 %668, %v34
  %v670 = vpop.permute.xlu0 %669
  %v672 = vadd.f32 %v664, %v670
  %v673 = vadd.f32 %v665, %v670
  %v674 = vadd.f32 %v666, %v670
  %v675 = vadd.f32 %v667, %v670
  %676 = vmatprep.subr.mxu0 0.0
  %677 = vmatpush1.xpose.msra.mxu0 0.0
  %678 = vmatprep.subr.mxu0 0.0
  %679 = vmatpush1.xpose.msra.mxu0 0.0
  %680 = vmatprep.subr.mxu0 0.0
  %681 = vmatpush1.xpose.msra.mxu0 0.0
  %682 = vmatprep.subr.mxu0 0.0
  %683 = vmatpush1.xpose.msra.mxu0 0.0
  %684 = vmatprep.subr.mxu0 0.0
  %685 = vmatpush1.xpose.msra.mxu0 0.0
  %686 = vmatprep.subr.mxu0 0.0
  %687 = vmatpush1.xpose.msra.mxu0 0.0
  %688 = vmatprep.subr.mxu0 0.0
  %689 = vmatpush1.xpose.msra.mxu0 0.0
  %690 = vmatprep.subr.mxu0 0.0
  %691 = vmatpush1.xpose.msra.mxu0 0.0
  %692 = vmatprep.subr.mxu0 0.0
  %693 = vmatpush1.xpose.msra.mxu0 0.0
  %694 = vmatprep.subr.mxu0 0.0
  %695 = vmatpush1.xpose.msra.mxu0 0.0
  %696 = vmatprep.subr.mxu0 0.0
  %697 = vmatpush1.xpose.msra.mxu0 0.0
  %698 = vmatprep.subr.mxu0 0.0
  %699 = vmatpush1.xpose.msra.mxu0 0.0
  %700 = vmatprep.subr.mxu0 %v27
  %701 = vmatpush1.xpose.msra.mxu0 %v26
  %702 = vmatprep.subr.mxu0 %v23
  %703 = vmatpush1.xpose.msra.mxu0 %v22
  %704 = vmatprep.subr.mxu0 %v19
  %705 = vmatpush1.xpose.msra.mxu0 %v18
  %706 = vmatprep.subr.mxu0 %v15
  %707 = vmatpush1.xpose.msra.mxu0 %v14
  %708 = vmatprep.subr.mxu0 0.0
  %709 = vmatpush2.xpose.msra.mxu0 0.0
  %710 = vmatprep.subr.mxu0 0.0
  %711 = vmatpush2.xpose.msra.mxu0 0.0
  %712 = vmatprep.subr.mxu0 0.0
  %713 = vmatpush2.xpose.msra.mxu0 0.0
  %714 = vmatprep.subr.mxu0 0.0
  %715 = vmatpush2.xpose.msra.mxu0 0.0
  %716 = vmatprep.subr.mxu0 0.0
  %717 = vmatpush2.xpose.msra.mxu0 0.0
  %718 = vmatprep.subr.mxu0 0.0
  %719 = vmatpush2.xpose.msra.mxu0 0.0
  %720 = vmatprep.subr.mxu0 0.0
  %721 = vmatpush2.xpose.msra.mxu0 0.0
  %722 = vmatprep.subr.mxu0 0.0
  %723 = vmatpush2.xpose.msra.mxu0 0.0
  %724 = vmatprep.subr.mxu0 0.0
  %725 = vmatpush2.xpose.msra.mxu0 0.0
  %726 = vmatprep.subr.mxu0 0.0
  %727 = vmatpush2.xpose.msra.mxu0 0.0
  %728 = vmatprep.subr.mxu0 0.0
  %729 = vmatpush2.xpose.msra.mxu0 0.0
  %730 = vmatprep.subr.mxu0 0.0
  %731 = vmatpush2.xpose.msra.mxu0 0.0
  %732 = vmatprep.subr.mxu0 0.0
  %733 = vmatpush2.xpose.msra.mxu0 0.0
  %734 = vmatprep.subr.mxu0 0.0
  %735 = vmatpush2.xpose.msra.mxu0 0.0
  %736 = vmatprep.subr.mxu0 0.0
  %737 = vmatpush2.xpose.msra.mxu0 0.0
  %738 = vmatprep.subr.mxu0 0.0
  %739 = vmatpush2.xpose.msra.mxu0 0.0
  %740 = vmatprep.mubr.f32.mxu0 %v673
  %741 = vmatmul.mubr.f32.gmra.mxu0 %v672
  %v742 = vpop.f32.mrf.mxu0
  %v743 = vadd.f32 0.0, %v742
  %v744 = vpop.f32.mrf.mxu0
  %745 = vdwg.mxu0
  %746 = vmatprep.subr.mxu0 0.0
  %747 = vmatpush1.xpose.msra.mxu0 0.0
  %748 = vmatprep.subr.mxu0 0.0
  %749 = vmatpush1.xpose.msra.mxu0 0.0
  %750 = vmatprep.subr.mxu0 0.0
  %751 = vmatpush1.xpose.msra.mxu0 0.0
  %752 = vmatprep.subr.mxu0 0.0
  %753 = vmatpush1.xpose.msra.mxu0 0.0
  %754 = vmatprep.subr.mxu0 0.0
  %755 = vmatpush1.xpose.msra.mxu0 0.0
  %756 = vmatprep.subr.mxu0 0.0
  %757 = vmatpush1.xpose.msra.mxu0 0.0
  %758 = vmatprep.subr.mxu0 0.0
  %759 = vmatpush1.xpose.msra.mxu0 0.0
  %760 = vmatprep.subr.mxu0 0.0
  %761 = vmatpush1.xpose.msra.mxu0 0.0
  %762 = vmatprep.subr.mxu0 0.0
  %763 = vmatpush1.xpose.msra.mxu0 0.0
  %764 = vmatprep.subr.mxu0 0.0
  %765 = vmatpush1.xpose.msra.mxu0 0.0
  %766 = vmatprep.subr.mxu0 0.0
  %767 = vmatpush1.xpose.msra.mxu0 0.0
  %768 = vmatprep.subr.mxu0 0.0
  %769 = vmatpush1.xpose.msra.mxu0 0.0
  %770 = vmatprep.subr.mxu0 %v29
  %771 = vmatpush1.xpose.msra.mxu0 %v28
  %772 = vmatprep.subr.mxu0 %v25
  %773 = vmatpush1.xpose.msra.mxu0 %v24
  %774 = vmatprep.subr.mxu0 %v21
  %775 = vmatpush1.xpose.msra.mxu0 %v20
  %776 = vmatprep.subr.mxu0 %v17
  %777 = vmatpush1.xpose.msra.mxu0 %v16
  %778 = vmatprep.subr.mxu0 0.0
  %779 = vmatpush2.xpose.msra.mxu0 0.0
  %780 = vmatprep.subr.mxu0 0.0
  %781 = vmatpush2.xpose.msra.mxu0 0.0
  %782 = vmatprep.subr.mxu0 0.0
  %783 = vmatpush2.xpose.msra.mxu0 0.0
  %784 = vmatprep.subr.mxu0 0.0
  %785 = vmatpush2.xpose.msra.mxu0 0.0
  %786 = vmatprep.subr.mxu0 0.0
  %787 = vmatpush2.xpose.msra.mxu0 0.0
  %788 = vmatprep.subr.mxu0 0.0
  %789 = vmatpush2.xpose.msra.mxu0 0.0
  %790 = vmatprep.subr.mxu0 0.0
  %791 = vmatpush2.xpose.msra.mxu0 0.0
  %792 = vmatprep.subr.mxu0 0.0
  %793 = vmatpush2.xpose.msra.mxu0 0.0
  %794 = vmatprep.subr.mxu0 0.0
  %795 = vmatpush2.xpose.msra.mxu0 0.0
  %796 = vmatprep.subr.mxu0 0.0
  %797 = vmatpush2.xpose.msra.mxu0 0.0
  %798 = vmatprep.subr.mxu0 0.0
  %799 = vmatpush2.xpose.msra.mxu0 0.0
  %800 = vmatprep.subr.mxu0 0.0
  %801 = vmatpush2.xpose.msra.mxu0 0.0
  %802 = vmatprep.subr.mxu0 0.0
  %803 = vmatpush2.xpose.msra.mxu0 0.0
  %804 = vmatprep.subr.mxu0 0.0
  %805 = vmatpush2.xpose.msra.mxu0 0.0
  %806 = vmatprep.subr.mxu0 0.0
  %807 = vmatpush2.xpose.msra.mxu0 0.0
  %808 = vmatprep.subr.mxu0 0.0
  %809 = vmatpush2.xpose.msra.mxu0 0.0
  %810 = vmatprep.mubr.f32.mxu0 %v675
  %811 = vmatmul.mubr.f32.gmra.mxu0 %v674
  %v812 = vpop.f32.mrf.mxu0
  %v813 = vadd.f32 %v743, %v812
  %v814 = vpop.f32.mrf.mxu0
  %815 = vdwg.mxu0
  %vm816 = vcmask 261120
  %v817 = vsel %vm816, %v813, 0.0
  %818 = vadd.xlane.f32.xlu0 %v817
  %v819 = vpop.xlane.xlu0 %818
  %v820 = vrcp.pop 32.0
  %v821 = vmul.f32 %v819, %v820
  %v822 = vsub.f32 %v813, %v821
  %v823 = vmul.f32 %v822, %v822
  %v824 = vsel %vm816, %v823, 0.0
  %825 = vadd.xlane.f32.xlu0 %v824
  %v826 = vpop.xlane.xlu0 %825
  %v827 = vmul.f32 %v826, %v820
  %v828 = vadd.f32 %v827, 0.00256
  %v829 = vrsqrt.pop %v828
  %v830 = vmul.f32 %v34, %v829
  %832 = vset.pattern.permute.xlu0 38
  %833 = vperm.xlu0 %832, %v830
  %v834 = vpop.permute.xlu0 %833
  %v836 = vmul.f32 %v822, %v834
  %837 = vset.pattern.permute.xlu0 39
  %838 = vperm.xlu0 %837, %v34
  %v839 = vpop.permute.xlu0 %838
  %v841 = vadd.f32 %v836, %v839
  %v842 = vxor.u32 %v841, 2147483648
  %v843 = vmul.f32 %v842, 1.442695
  %v844 = vpow.pop %v843
  %v845 = vadd.f32 %v844, 1.0
  %v846 = vrcp.pop %v845
  %v847 = vmul.f32 1.0, %v846
  %v848 = vmul.f32 %v841, %v847
  %v850 = vsel %vm816, %v848, 0
  %852 = vmatprep.subr.mxu0 0.0
  %853 = vmatpush1.msra.mxu0 0.0
  %854 = vmatprep.subr.mxu0 0.0
  %855 = vmatpush1.msra.mxu0 0.0
  %856 = vmatprep.subr.mxu0 0.0
  %857 = vmatpush1.msra.mxu0 0.0
  %858 = vmatprep.subr.mxu0 0.0
  %859 = vmatpush1.msra.mxu0 0.0
  %860 = vmatprep.subr.mxu0 0.0
  %861 = vmatpush1.msra.mxu0 0.0
  %862 = vmatprep.subr.mxu0 0.0
  %863 = vmatpush1.msra.mxu0 0.0
  %864 = vmatprep.subr.mxu0 0.0
  %865 = vmatpush1.msra.mxu0 0.0
  %866 = vmatprep.subr.mxu0 0.0
  %867 = vmatpush1.msra.mxu0 0.0
  %868 = vmatprep.subr.mxu0 0.0
  %869 = vmatpush1.msra.mxu0 0.0
  %870 = vmatprep.subr.mxu0 0.0
  %871 = vmatpush1.msra.mxu0 0.0
  %872 = vmatprep.subr.mxu0 0.0
  %873 = vmatpush1.msra.mxu0 0.0
  %874 = vmatprep.subr.mxu0 0.0
  %875 = vmatpush1.msra.mxu0 0.0
  %876 = vmatprep.subr.mxu0 %v27
  %877 = vmatpush1.msra.mxu0 %v26
  %878 = vmatprep.subr.mxu0 %v23
  %879 = vmatpush1.msra.mxu0 %v22
  %880 = vmatprep.subr.mxu0 %v19
  %881 = vmatpush1.msra.mxu0 %v18
  %882 = vmatprep.subr.mxu0 %v15
  %883 = vmatpush1.msra.mxu0 %v14
  %884 = vmatprep.subr.mxu0 0.0
  %885 = vmatpush2.msra.mxu0 0.0
  %886 = vmatprep.subr.mxu0 0.0
  %887 = vmatpush2.msra.mxu0 0.0
  %888 = vmatprep.subr.mxu0 0.0
  %889 = vmatpush2.msra.mxu0 0.0
  %890 = vmatprep.subr.mxu0 0.0
  %891 = vmatpush2.msra.mxu0 0.0
  %892 = vmatprep.subr.mxu0 0.0
  %893 = vmatpush2.msra.mxu0 0.0
  %894 = vmatprep.subr.mxu0 0.0
  %895 = vmatpush2.msra.mxu0 0.0
  %896 = vmatprep.subr.mxu0 0.0
  %897 = vmatpush2.msra.mxu0 0.0
  %898 = vmatprep.subr.mxu0 0.0
  %899 = vmatpush2.msra.mxu0 0.0
  %900 = vmatprep.subr.mxu0 0.0
  %901 = vmatpush2.msra.mxu0 0.0
  %902 = vmatprep.subr.mxu0 0.0
  %903 = vmatpush2.msra.mxu0 0.0
  %904 = vmatprep.subr.mxu0 0.0
  %905 = vmatpush2.msra.mxu0 0.0
  %906 = vmatprep.subr.mxu0 0.0
  %907 = vmatpush2.msra.mxu0 0.0
  %908 = vmatprep.subr.mxu0 0.0
  %909 = vmatpush2.msra.mxu0 0.0
  %910 = vmatprep.subr.mxu0 0.0
  %911 = vmatpush2.msra.mxu0 0.0
  %912 = vmatprep.subr.mxu0 0.0
  %913 = vmatpush2.msra.mxu0 0.0
  %914 = vmatprep.subr.mxu0 0.0
  %915 = vmatpush2.msra.mxu0 0.0
  %916 = vmatprep.mubr.f32.mxu0 0.0
  %917 = vmatmul.mubr.f32.gmra.mxu0 %v850
  %v918 = vpop.f32.mrf.mxu0
  %v919 = vadd.f32 0.0, %v918
  %v920 = vpop.f32.mrf.mxu0
  %v921 = vadd.f32 0.0, %v920
  %922 = vdwg.mxu0
  %923 = vmatprep.subr.mxu0 0.0
  %924 = vmatpush1.msra.mxu0 0.0
  %925 = vmatprep.subr.mxu0 0.0
  %926 = vmatpush1.msra.mxu0 0.0
  %927 = vmatprep.subr.mxu0 0.0
  %928 = vmatpush1.msra.mxu0 0.0
  %929 = vmatprep.subr.mxu0 0.0
  %930 = vmatpush1.msra.mxu0 0.0
  %931 = vmatprep.subr.mxu0 0.0
  %932 = vmatpush1.msra.mxu0 0.0
  %933 = vmatprep.subr.mxu0 0.0
  %934 = vmatpush1.msra.mxu0 0.0
  %935 = vmatprep.subr.mxu0 0.0
  %936 = vmatpush1.msra.mxu0 0.0
  %937 = vmatprep.subr.mxu0 0.0
  %938 = vmatpush1.msra.mxu0 0.0
  %939 = vmatprep.subr.mxu0 0.0
  %940 = vmatpush1.msra.mxu0 0.0
  %941 = vmatprep.subr.mxu0 0.0
  %942 = vmatpush1.msra.mxu0 0.0
  %943 = vmatprep.subr.mxu0 0.0
  %944 = vmatpush1.msra.mxu0 0.0
  %945 = vmatprep.subr.mxu0 0.0
  %946 = vmatpush1.msra.mxu0 0.0
  %947 = vmatprep.subr.mxu0 %v29
  %948 = vmatpush1.msra.mxu0 %v28
  %949 = vmatprep.subr.mxu0 %v25
  %950 = vmatpush1.msra.mxu0 %v24
  %951 = vmatprep.subr.mxu0 %v21
  %952 = vmatpush1.msra.mxu0 %v20
  %953 = vmatprep.subr.mxu0 %v17
  %954 = vmatpush1.msra.mxu0 %v16
  %955 = vmatprep.subr.mxu0 0.0
  %956 = vmatpush2.msra.mxu0 0.0
  %957 = vmatprep.subr.mxu0 0.0
  %958 = vmatpush2.msra.mxu0 0.0
  %959 = vmatprep.subr.mxu0 0.0
  %960 = vmatpush2.msra.mxu0 0.0
  %961 = vmatprep.subr.mxu0 0.0
  %962 = vmatpush2.msra.mxu0 0.0
  %963 = vmatprep.subr.mxu0 0.0
  %964 = vmatpush2.msra.mxu0 0.0
  %965 = vmatprep.subr.mxu0 0.0
  %966 = vmatpush2.msra.mxu0 0.0
  %967 = vmatprep.subr.mxu0 0.0
  %968 = vmatpush2.msra.mxu0 0.0
  %969 = vmatprep.subr.mxu0 0.0
  %970 = vmatpush2.msra.mxu0 0.0
  %971 = vmatprep.subr.mxu0 0.0
  %972 = vmatpush2.msra.mxu0 0.0
  %973 = vmatprep.subr.mxu0 0.0
  %974 = vmatpush2.msra.mxu0 0.0
  %975 = vmatprep.subr.mxu0 0.0
  %976 = vmatpush2.msra.mxu0 0.0
  %977 = vmatprep.subr.mxu0 0.0
  %978 = vmatpush2.msra.mxu0 0.0
  %979 = vmatprep.subr.mxu0 0.0
  %980 = vmatpush2.msra.mxu0 0.0
  %981 = vmatprep.subr.mxu0 0.0
  %982 = vmatpush2.msra.mxu0 0.0
  %983 = vmatprep.subr.mxu0 0.0
  %984 = vmatpush2.msra.mxu0 0.0
  %985 = vmatprep.subr.mxu0 0.0
  %986 = vmatpush2.msra.mxu0 0.0
  %987 = vmatprep.mubr.f32.mxu0 0.0
  %988 = vmatmul.mubr.f32.gmra.mxu0 %v850
  %v989 = vpop.f32.mrf.mxu0
  %v990 = vadd.f32 0.0, %v989
  %v991 = vpop.f32.mrf.mxu0
  %v992 = vadd.f32 0.0, %v991
  %993 = vdwg.mxu0
  %v994 = vadd.f32 %v672, %v919
  %v995 = vadd.f32 %v673, %v921
  %v996 = vadd.f32 %v674, %v990
  %v997 = vadd.f32 %v675, %v992
  %998 = vst [vmem:[%s3] sm:$0xff] %v994
  %999 = vst [vmem:[%s3 + $0x8] sm:$0xff] %v995
  %s1000 = scalar_lea.vmem %s3, 16
  %1001 = vst [vmem:[%s1000] sm:$0xff] %v996
  %1002 = vst [vmem:[%s1000 + $0x8] sm:$0xff] %v997
  // Predicated region
  $region14: #{bcresblock_forward.1} parent=0 // pred_check
    _
  $region15: #{bcresblock_forward.1} parent=0 // pred_check_branch
    %1004 = sbr.rel (0) target = $region17
  $region16: #{bcresblock_forward.1} parent=0 // pred_region
    _
  $region17: #{bcresblock_forward.1} parent=0 // pred_fallthru
    _
  // Predicated region
  $region18: #{bcresblock_forward.1} parent=0 // pred_check
    _
  $region19: #{bcresblock_forward.1} parent=0 // pred_check_branch
    %1006 = sbr.rel (0) target = $region21
  $region20: #{bcresblock_forward.1} parent=0 // pred_region
    _
  $region21: #{bcresblock_forward.1} parent=0 // pred_fallthru
    _

</llo_original>
